<compile_context>
chip_gen: v7x
topology: tpu7x:2x2x1
jax: 0.10.0
libtpu: 0.0.40
codegen_flags: <defaults>
</compile_context>

<pallas_src>
import functools

import jax
import jax.numpy as jnp
from jax.experimental import pallas as pl
from jax.experimental.pallas import tpu as pltpu


def _sigmoid_mul_kernel(s_ref, x_ref, o_ref, *, tc, gate_resident):
    # s_ref: (NC, 1) resident gate column  OR  (tc, 1) streamed block
    # x_ref: (tc, thw) feature tile, o_ref: (tc, thw) output tile
    if gate_resident:
        start = pl.program_id(0) * tc
        if tc % 8 == 0:
            start = pl.multiple_of(start, 8)
        s = s_ref[pl.ds(start, tc), :]
    else:
        s = s_ref[...]
    # Sigmoid in f32 on the tiny (tc, 1) column (EUP slot, effectively free),
    # then multiply in the feature dtype (native bf16 on v6e/v7x, f32 on v5e).
    gate = jax.nn.sigmoid(s.astype(jnp.float32))
    x = x_ref[...]
    o_ref[...] = (gate.astype(x.dtype) * x).astype(o_ref.dtype)


def sigmoid_mul(x347, x343, *, tile_budget_bytes=2 * 1024 * 1024):
    """x347: (N, C, 1, 1) gate pre-activation, x343: (N, C, H, W) -> (N, C, H, W)."""
    N, C, H, W = x343.shape
    assert x347.shape == (N, C, 1, 1)
    NC = N * C
    HW = H * W
    itemsize = jnp.dtype(x343.dtype).itemsize

    s2d = x347.reshape(NC, 1)
    x2d = x343.reshape(NC, HW)

    total_bytes = NC * HW * itemsize
    # ~1-4 MiB tiles to amortize the ~0.35us/step overhead, but keep at least
    # ~4 grid steps when the array is big enough (v7x megacore sharding);
    # never shrink a tile below ~256 KiB for that reason.
    per_tile_budget = min(tile_budget_bytes, max(total_bytes // 4, 256 * 1024))

    # --- spatial (lane) tile --------------------------------------------------
    if HW % 128 == 0:
        # Lane-dense spatial tiling available: pick the largest multiple-of-128
        # divisor of HW that leaves room for >= 8 channel rows in the budget.
        max_thw = max(128, per_tile_budget // (8 * itemsize))
        thw = 128
        d = 128
        while d <= HW:
            if HW % d == 0 and d <= max_thw:
                thw = d
            d += 128
    else:
        # Non-128-multiple spatial extent (e.g. 14*14=196): keep the full row,
        # so every HBM block is fully contiguous; only the lane tail of the
        # vector stores is masked, which is cheap at this width.
        thw = HW

    # --- channel (sublane) tile -----------------------------------------------
    cap = max(8, per_tile_budget // (thw * itemsize))
    tc = 0
    for cand in range(8, min(NC, cap) + 1, 8):
        if NC % cand == 0:
            tc = cand
    if tc == 0:
        # No multiple-of-8 divisor of NC fits the budget: fall back to one
        # full-extent channel block (block == full dim is always legal).
        tc = NC

    grid = (NC // tc, HW // thw)

    # Gate: VMEM-resident column, DMA'd once (constant block index), unless NC
    # is so large that the lane-padded (NC, 1) column gets expensive in VMEM;
    # then stream a (tc, 1) block per step instead.
    gate_resident = NC <= 8192
    if gate_resident:
        gate_spec = pl.BlockSpec((NC, 1), lambda i, j: (0, 0))
        gate_vmem = 2 * (((NC + 7) // 8) * 8) * 128 * 4
    else:
        gate_spec = pl.BlockSpec((tc, 1), lambda i, j: (i, 0))
        gate_vmem = 2 * (((tc + 7) // 8) * 8) * 128 * 4

    tile_bytes = tc * thw * itemsize
    # 2x double-buffered (input + output) tiles + gate + headroom; keep the
    # scoped limit well under v7x's 64 MiB physical VMEM.
    vmem_est = 4 * tile_bytes + gate_vmem + (2 << 20)
    vmem_limit = int(min(48 * 1024 * 1024, max(vmem_est, 16 * 1024 * 1024)))

    kernel = functools.partial(
        _sigmoid_mul_kernel, tc=tc, gate_resident=gate_resident
    )

    out2d = pl.pallas_call(
        kernel,
        out_shape=jax.ShapeDtypeStruct((NC, HW), x343.dtype),
        grid_spec=pltpu.PrefetchScalarGridSpec(
            num_scalar_prefetch=0,
            grid=grid,
            in_specs=[
                gate_spec,                                       # gate
                pl.BlockSpec((tc, thw), lambda i, j: (i, j)),    # features
            ],
            out_specs=pl.BlockSpec((tc, thw), lambda i, j: (i, j)),
        ),
        compiler_params=pltpu.CompilerParams(
            dimension_semantics=("parallel", "parallel"),
            vmem_limit_bytes=vmem_limit,
        ),
        cost_estimate=pl.CostEstimate(
            flops=NC * HW,
            transcendentals=NC,
            bytes_accessed=2 * NC * HW * itemsize
            + NC * jnp.dtype(x347.dtype).itemsize,
        ),
    )(s2d, x2d)

    return out2d.reshape(N, C, H, W)


if __name__ == "__main__":
    key = jax.random.PRNGKey(0)
    k1, k2 = jax.random.split(key)

    # Shapes straight from the original module:
    #   x343: (1, 1344, 14, 14) features, x347: (1, 1344, 1, 1) SE gate.
    N, C, H, W = 1, 1344, 14, 14
    x343 = jax.random.normal(k1, (N, C, H, W), dtype=jnp.float32)
    x347 = jax.random.normal(k2, (N, C, 1, 1), dtype=jnp.float32)

    out = sigmoid_mul(x347, x343)
    out = jax.block_until_ready(out)

    # Reference in plain JAX.
    ref = jax.nn.sigmoid(x347) * x343
    assert out.shape == ref.shape
    assert jnp.allclose(out, ref, atol=1e-5, rtol=1e-5), float(
        jnp.max(jnp.abs(out - ref))
    )

    print("KERNEL_OK")
</pallas_src>

<mosaic_0001>
module attributes {stable_mosaic.version = 11 : i64} {
  func.func @_sigmoid_mul_kernel(%arg0: i32, %arg1: i32, %arg2: memref<1344x1xf32, #tpu.memory_space<vmem>>, %arg3: memref<336x196xf32, #tpu.memory_space<vmem>>, %arg4: memref<336x196xf32, #tpu.memory_space<vmem>>) attributes {dimension_semantics = [#tpu.dimension_semantics<parallel>, #tpu.dimension_semantics<parallel>], iteration_bounds = array<i64: 4, 1>, scalar_prefetch = 0 : i64, scratch_operands = 0 : i64, tpu.core_type = #tpu.core_type<tc>, window_params = [{pipeline_mode = #tpu.pipeline_mode<synchronous>, transform_indices = @transform_0, window_bounds = array<i64: 1344, 1>}, {transform_indices = @transform_1, window_bounds = array<i64: 336, 196>}, {transform_indices = @transform_2, window_bounds = array<i64: 336, 196>}]} {
    %c336_i32 = arith.constant 336 : i32
    %0 = arith.muli %arg0, %c336_i32 : i32
    %1 = tpu.assume_multiple %0, 8 : i32
    %2 = arith.index_cast %1 : i32 to index
    %c0 = arith.constant 0 : index
    %3 = vector.load %arg2[%2, %c0] : memref<1344x1xf32, #tpu.memory_space<vmem>>, vector<336x1xf32>
    %4 = arith.negf %3 : vector<336x1xf32>
    %5 = math.exp %4 : vector<336x1xf32>
    %cst = arith.constant 1.000000e+00 : f32
    %6 = vector.broadcast %cst : f32 to vector<336x1xf32>
    %7 = arith.addf %6, %5 : vector<336x1xf32>
    %8 = arith.divf %6, %7 : vector<336x1xf32>
    %c0_0 = arith.constant 0 : index
    %c0_1 = arith.constant 0 : index
    %9 = vector.load %arg3[%c0_0, %c0_1] : memref<336x196xf32, #tpu.memory_space<vmem>>, vector<336x196xf32>
    %10 = vector.broadcast %8 : vector<336x1xf32> to vector<336x196xf32>
    %11 = arith.mulf %10, %9 : vector<336x196xf32>
    %c0_2 = arith.constant 0 : index
    %c0_3 = arith.constant 0 : index
    %12 = vector.load %arg4[%c0_2, %c0_3] : memref<336x196xf32, #tpu.memory_space<vmem>>, vector<336x196xf32>
    tpu.vector_store %arg4[%c0_2, %c0_3], %11 {strides = array<i32>} : memref<336x196xf32, #tpu.memory_space<vmem>>, vector<336x196xf32>,
    return
  }
  func.func @transform_0(%arg0: i32, %arg1: i32) -> (i32, i32) {
    %c0_i32 = arith.constant 0 : i32
    %c0_i32_0 = arith.constant 0 : i32
    %c0_i32_1 = arith.constant 0 : i32
    return %c0_i32, %c0_i32_0 : i32, i32
  }
  func.func @transform_1(%arg0: i32, %arg1: i32) -> (i32, i32) {
    %c0_i32 = arith.constant 0 : i32
    return %arg0, %arg1 : i32, i32
  }
  func.func @transform_2(%arg0: i32, %arg1: i32) -> (i32, i32) {
    %c0_i32 = arith.constant 0 : i32
    return %arg0, %arg1 : i32, i32
  }
}

</mosaic_0001>

<llo_original>
// kernel: tpu_custom_call.1
$region0: #{tpu_custom_call.1}
  #allocation0 [shape = 'u32[]', space=smem, size = 0x4, offset = 0x4, fixed_abs, tag = 'smem constant byte address 0x4 - core index']
  #allocation1 [shape = 'u32[144,128]{1,0:T(1,128)}', space=vmem, size = 0x12000, scoped, tag = 'internal scratch']
  %s0 = inlined_call_operand.vmem [shape: f32[1344,1], index: 0, kind: input, shape index: {}]
  %s1 = inlined_call_operand.vmem [shape: f32[1344,196], index: 1, kind: input, shape index: {}]
  %s2 = inlined_call_operand.vmem [shape: f32[1344,196], index: 2, kind: output, shape index: {}]
  %s3 = sld [smem:[#allocation0]]
  $region41: #{tpu_custom_call.1} parent=0
    _
  %s5 = ssub.s32 1, %s3
  %s6 = scalar_select 0, %s5, %s3
  loop: start=0, step=1, limit=6
  $region2: #{tpu_custom_call.1} parent=0 // loop_pre_header
    _
  $region3: #{tpu_custom_call.1} parent=0 // loop_header
    %s8 = sphi 0, %s12
    %p9 = scmp.ge.s32.totalorder %s8, 6
    %s15 = sphi 0, %s27
    %s16 = sphi 0, %s23
    %s17 = sphi 0, %s15
    %s18 = sphi 0, %s16
    %s19 = sphi 0, %s17
    %s20 = sphi 0, %s18
    %s28 = sphi 0, %s28
    %s30 = sphi 0, %s28
    %s31 = sphi 0, %s30
    %s45 = sphi 0, %s31
    %s53 = sphi 0, %s55
    %s56 = sphi 0, %s53
    %s57 = sphi 0, %s56
    %s73 = sphi 0, %s57
    %s81 = sphi 0, %s83
    %s84 = sphi 0, %s81
    %s85 = sphi 0, %s84
    %s101 = sphi 0, %s85
  $region4: #{tpu_custom_call.1} parent=0 // loop_header_branch
    %11 = sbr.rel (%p9) target = $region8
  $region5: #{tpu_custom_call.1} parent=0 // loop_body
    %s13 = ssub.s32 %s8, 1
    %s14 = ssub.s32 %s8, 2
    %s21 = sadd.s32 1, %s16
    %p22 = scmp.ge.s32.totalorder %s21, 1
    %s23 = scalar_select %p22, 0, %s21
    %s24 = sadd.s32 1, %s15
    %s25 = scalar_select %p22, %s24, %s15
    %p26 = scmp.ge.s32.totalorder %s25, 4
    %s27 = scalar_select %p26, 0, %s25
    %s29 = sadd.s32 %s28, 1
    %p32 = scmp.eq.s32.totalorder %s8, 3
    %p33 = scmp.ne.s32.totalorder %s28, %s30
    %p34 = scmp.eq.s32.totalorder %s8, 0
    %p35 = por %p33, %p34
    %p36 = scmp.ne.s32.totalorder %s28, %s30
    %p37 = scmp.eq.s32.totalorder %s13, 3
    %p38 = por %p36, %p37
    %p39 = scmp.ne.s32.totalorder %s30, %s31
    %p40 = scmp.eq.s32.totalorder %s13, 0
    %p41 = por %p39, %p40
    %p42 = scmp.ne.s32.totalorder %s30, %s31
    %p43 = scmp.eq.s32.totalorder %s14, 3
    %p44 = por %p42, %p43
    %p46 = scmp.ne.s32.totalorder %s31, %s45
    %p47 = scmp.eq.s32.totalorder %s14, 0
    %p48 = por %p46, %p47
    %s49 = ssub.s32 %s15, %s27
    %s50 = ssub.s32 %s16, %s23
    %s51 = sor.u32 %s49, %s50
    %p52 = scmp.eq.s32.totalorder %s51, 0
    %s54 = sadd.s32 %s53, 1
    %s55 = scalar_select %p52, %s53, %s54
    %p58 = pneg %p52
    %p59 = scmp.eq.s32.totalorder %s8, 3
    %p60 = por %p58, %p59
    %p61 = scmp.ne.s32.totalorder %s53, %s56
    %p62 = scmp.eq.s32.totalorder %s8, 0
    %p63 = por %p61, %p62
    %p64 = scmp.ne.s32.totalorder %s53, %s56
    %p65 = scmp.eq.s32.totalorder %s13, 3
    %p66 = por %p64, %p65
    %p67 = scmp.ne.s32.totalorder %s56, %s57
    %p68 = scmp.eq.s32.totalorder %s13, 0
    %p69 = por %p67, %p68
    %p70 = scmp.ne.s32.totalorder %s56, %s57
    %p71 = scmp.eq.s32.totalorder %s14, 3
    %p72 = por %p70, %p71
    %p74 = scmp.ne.s32.totalorder %s57, %s73
    %p75 = scmp.eq.s32.totalorder %s14, 0
    %p76 = por %p74, %p75
    %s77 = ssub.s32 %s15, %s27
    %s78 = ssub.s32 %s16, %s23
    %s79 = sor.u32 %s77, %s78
    %p80 = scmp.eq.s32.totalorder %s79, 0
    %s82 = sadd.s32 %s81, 1
    %s83 = scalar_select %p80, %s81, %s82
    %p86 = pneg %p80
    %p87 = scmp.eq.s32.totalorder %s8, 3
    %p88 = por %p86, %p87
    %p89 = scmp.ne.s32.totalorder %s81, %s84
    %p90 = scmp.eq.s32.totalorder %s8, 0
    %p91 = por %p89, %p90
    %p92 = scmp.ne.s32.totalorder %s81, %s84
    %p93 = scmp.eq.s32.totalorder %s13, 3
    %p94 = por %p92, %p93
    %p95 = scmp.ne.s32.totalorder %s84, %s85
    %p96 = scmp.eq.s32.totalorder %s13, 0
    %p97 = por %p95, %p96
    %p98 = scmp.ne.s32.totalorder %s84, %s85
    %p99 = scmp.eq.s32.totalorder %s14, 3
    %p100 = por %p98, %p99
    %p102 = scmp.ne.s32.totalorder %s85, %s101
    %p103 = scmp.eq.s32.totalorder %s14, 0
    %p104 = por %p102, %p103
    %p105 = scmp.le.s32.totalorder 1, %s8
    %p106 = scmp.lt.s32.totalorder %s8, 5
    %p107 = pnand %p105, %p106
    %p108 = pneg %p107
    // Predicated region
    $region9: #{tpu_custom_call.1} parent=5 // pred_check
      _
    $region10: #{tpu_custom_call.1} parent=5 // pred_check_branch
      %110 = sbr.rel (%p107) target = $region12
    $region11: #{tpu_custom_call.1} parent=5 // pred_region
      %s111 = ssub.s32 %s8, 1
      // Predicated region
      $region13: #{tpu_custom_call.1} parent=11 // pred_check
        %p112 = pneg %p41
      $region14: #{tpu_custom_call.1} parent=11 // pred_check_branch
        %114 = sbr.rel (%p112) target = $region16
      $region15: #{tpu_custom_call.1} parent=11 // pred_region
        _
      $region16: #{tpu_custom_call.1} parent=11 // pred_fallthru
        _
    $region12: #{tpu_custom_call.1} parent=5 // pred_fallthru
      _
    %p115 = scmp.lt.s32.totalorder %s8, 4
    // Predicated region
    $region17: #{tpu_custom_call.1} parent=5 // pred_check
      %p116 = pneg %p115
    $region18: #{tpu_custom_call.1} parent=5 // pred_check_branch
      %118 = sbr.rel (%p116) target = $region20
    $region19: #{tpu_custom_call.1} parent=5 // pred_region
      // Predicated region
      $region21: #{tpu_custom_call.1} parent=19 // pred_check
        %p119 = pneg %p63
      $region22: #{tpu_custom_call.1} parent=19 // pred_check_branch
        %121 = sbr.rel (%p119) target = $region24
      $region23: #{tpu_custom_call.1} parent=19 // pred_region
        %s122 = smul.u32 42, %s15
        %s123 = smul.u32 2, %s16
        %p124 = scmp.lt.s32.totalorder %s122, 167
        %s125 = scalar_select %p124, %s122, 167
        %p126 = scmp.lt.s32.totalorder %s123, 1
        %s127 = scalar_select %p126, %s123, 1
        %s128 = smul.addr %s125, 2
        %s129 = sadd.s32 %s127, %s128
        %s130 = smul.addr %s129, 8
        %s131 = scalar_lea.vmem %s1, %s130
        %s132 = smul.u32 42, %s15
        %s133 = smul.u32 2, %s16
      $region24: #{tpu_custom_call.1} parent=19 // pred_fallthru
        _
    $region20: #{tpu_custom_call.1} parent=5 // pred_fallthru
      _
    %p134 = scmp.le.s32.totalorder 1, %s8
    %p135 = scmp.lt.s32.totalorder %s8, 5
    %p136 = pnand %p134, %p135
    %p137 = pneg %p136
    // Predicated region
    $region25: #{tpu_custom_call.1} parent=5 // pred_check
      _
    $region26: #{tpu_custom_call.1} parent=5 // pred_check_branch
      %139 = sbr.rel (%p136) target = $region28
    $region27: #{tpu_custom_call.1} parent=5 // pred_region
      %s140 = ssub.s32 %s8, 1
      %p141 = pneg %p41
      %p142 = pneg %p38
      %s143 = smul.u32 42, %s17
      %s144 = smul.u32 2, %s18
      %p145 = scmp.lt.s32.totalorder %s143, 167
      %s146 = scalar_select %p145, %s143, 167
      %p147 = scmp.lt.s32.totalorder %s144, 1
      %s148 = scalar_select %p147, %s144, 1
      %s149 = smul.addr %s146, 2
      %s150 = sadd.s32 %s148, %s149
      %s151 = smul.addr %s150, 8
      %s152 = scalar_lea.vmem %s1, %s151
      %p153 = pneg %p69
      %p154 = pneg %p66
      %p155 = pneg %p97
      %p156 = pneg %p94
      %s157 = smul.u32 42, %s17
      %s158 = smul.u32 2, %s18
      %p159 = scmp.lt.s32.totalorder %s157, 167
      %s160 = scalar_select %p159, %s157, 167
      %p161 = scmp.lt.s32.totalorder %s158, 1
      %s162 = scalar_select %p161, %s158, 1
      %s163 = smul.addr %s160, 2
      %s164 = sadd.s32 %s162, %s163
      %s165 = smul.addr %s164, 8
      %s166 = scalar_lea.vmem %s2, %s165
      %s167 = smul.u32 42, %s17
      %s168 = smul.u32 2, %s18
      %p169 = scmp.lt.s32.totalorder %s167, 167
      %s170 = scalar_select %p169, %s167, 167
      %p171 = scmp.lt.s32.totalorder %s168, 1
      %s172 = scalar_select %p171, %s168, 1
      %s173 = smul.addr %s170, 2
      %s174 = sadd.s32 %s172, %s173
      %s175 = smul.addr %s174, 8
      %s176 = scalar_lea.vmem %s1, %s175
      %s177 = smul.u32 42, %s17
      %s178 = smul.u32 2, %s18
      %s179 = smul.u32 42, %s17
      %s180 = smul.u32 2, %s18
      %p181 = scmp.lt.s32.totalorder %s179, 167
      %s182 = scalar_select %p181, %s179, 167
      %p183 = scmp.lt.s32.totalorder %s180, 1
      %s184 = scalar_select %p183, %s180, 1
      %s185 = smul.addr %s182, 2
      %s186 = sadd.s32 %s184, %s185
      %s187 = smul.addr %s186, 8
      %s188 = scalar_lea.vmem %s2, %s187
      %s189 = smul.u32 42, %s17
      %s190 = smul.u32 2, %s18
      %s191 = smul.u32 %s17, 336
      %s192 = scalar_lea.vmem %s0, %s191
      %v193 = vld [vmem:[%s192] sm:$0xff]
      %v194 = vld [vmem:[%s192 + $0x8] sm:$0xff]
      %v195 = vld [vmem:[%s192 + $0x10] sm:$0xff]
      %v196 = vld [vmem:[%s192 + $0x18] sm:$0xff]
      %v197 = vld [vmem:[%s192 + $0x20] sm:$0xff]
      %v198 = vld [vmem:[%s192 + $0x28] sm:$0xff]
      %v199 = vld [vmem:[%s192 + $0x30] sm:$0xff]
      %v200 = vld [vmem:[%s192 + $0x38] sm:$0xff]
      %v201 = vld [vmem:[%s192 + $0x40] sm:$0xff]
      %v202 = vld [vmem:[%s192 + $0x48] sm:$0xff]
      %v203 = vld [vmem:[%s192 + $0x50] sm:$0xff]
      %v204 = vld [vmem:[%s192 + $0x58] sm:$0xff]
      %v205 = vld [vmem:[%s192 + $0x60] sm:$0xff]
      %v206 = vld [vmem:[%s192 + $0x68] sm:$0xff]
      %v207 = vld [vmem:[%s192 + $0x70] sm:$0xff]
      %v208 = vld [vmem:[%s192 + $0x78] sm:$0xff]
      %v209 = vld [vmem:[%s192 + $0x80] sm:$0xff]
      %v210 = vld [vmem:[%s192 + $0x88] sm:$0xff]
      %v211 = vld [vmem:[%s192 + $0x90] sm:$0xff]
      %v212 = vld [vmem:[%s192 + $0x98] sm:$0xff]
      %v213 = vld [vmem:[%s192 + $0xa0] sm:$0xff]
      %v214 = vld [vmem:[%s192 + $0xa8] sm:$0xff]
      %v215 = vld [vmem:[%s192 + $0xb0] sm:$0xff]
      %v216 = vld [vmem:[%s192 + $0xb8] sm:$0xff]
      %v217 = vld [vmem:[%s192 + $0xc0] sm:$0xff]
      %v218 = vld [vmem:[%s192 + $0xc8] sm:$0xff]
      %v219 = vld [vmem:[%s192 + $0xd0] sm:$0xff]
      %v220 = vld [vmem:[%s192 + $0xd8] sm:$0xff]
      %v221 = vld [vmem:[%s192 + $0xe0] sm:$0xff]
      %v222 = vld [vmem:[%s192 + $0xe8] sm:$0xff]
      %v223 = vld [vmem:[%s192 + $0xf0] sm:$0xff]
      %v224 = vld [vmem:[%s192 + $0xf8] sm:$0xff]
      %v225 = vld [vmem:[%s192 + $0x100] sm:$0xff]
      %v226 = vld [vmem:[%s192 + $0x108] sm:$0xff]
      %v227 = vld [vmem:[%s192 + $0x110] sm:$0xff]
      %v228 = vld [vmem:[%s192 + $0x118] sm:$0xff]
      %v229 = vld [vmem:[%s192 + $0x120] sm:$0xff]
      %v230 = vld [vmem:[%s192 + $0x128] sm:$0xff]
      %v231 = vld [vmem:[%s192 + $0x130] sm:$0xff]
      %v232 = vld [vmem:[%s192 + $0x138] sm:$0xff]
      %v233 = vld [vmem:[%s192 + $0x140] sm:$0xff]
      %v234 = vld [vmem:[%s192 + $0x148] sm:$0xff]
      %v235 = vxor.u32 %v193, 2147483648
      %v236 = vxor.u32 %v194, 2147483648
      %v237 = vxor.u32 %v195, 2147483648
      %v238 = vxor.u32 %v196, 2147483648
      %v239 = vxor.u32 %v197, 2147483648
      %v240 = vxor.u32 %v198, 2147483648
      %v241 = vxor.u32 %v199, 2147483648
      %v242 = vxor.u32 %v200, 2147483648
      %v243 = vxor.u32 %v201, 2147483648
      %v244 = vxor.u32 %v202, 2147483648
      %v245 = vxor.u32 %v203, 2147483648
      %v246 = vxor.u32 %v204, 2147483648
      %v247 = vxor.u32 %v205, 2147483648
      %v248 = vxor.u32 %v206, 2147483648
      %v249 = vxor.u32 %v207, 2147483648
      %v250 = vxor.u32 %v208, 2147483648
      %v251 = vxor.u32 %v209, 2147483648
      %v252 = vxor.u32 %v210, 2147483648
      %v253 = vxor.u32 %v211, 2147483648
      %v254 = vxor.u32 %v212, 2147483648
      %v255 = vxor.u32 %v213, 2147483648
      %v256 = vxor.u32 %v214, 2147483648
      %v257 = vxor.u32 %v215, 2147483648
      %v258 = vxor.u32 %v216, 2147483648
      %v259 = vxor.u32 %v217, 2147483648
      %v260 = vxor.u32 %v218, 2147483648
      %v261 = vxor.u32 %v219, 2147483648
      %v262 = vxor.u32 %v220, 2147483648
      %v263 = vxor.u32 %v221, 2147483648
      %v264 = vxor.u32 %v222, 2147483648
      %v265 = vxor.u32 %v223, 2147483648
      %v266 = vxor.u32 %v224, 2147483648
      %v267 = vxor.u32 %v225, 2147483648
      %v268 = vxor.u32 %v226, 2147483648
      %v269 = vxor.u32 %v227, 2147483648
      %v270 = vxor.u32 %v228, 2147483648
      %v271 = vxor.u32 %v229, 2147483648
      %v272 = vxor.u32 %v230, 2147483648
      %v273 = vxor.u32 %v231, 2147483648
      %v274 = vxor.u32 %v232, 2147483648
      %v275 = vxor.u32 %v233, 2147483648
      %v276 = vxor.u32 %v234, 2147483648
      %v277 = vmul.f32 %v235, 1.442695
      %v278 = vpow.pop %v277
      %v279 = vmul.f32 %v236, 1.442695
      %v280 = vpow.pop %v279
      %v281 = vmul.f32 %v237, 1.442695
      %v282 = vpow.pop %v281
      %v283 = vmul.f32 %v238, 1.442695
      %v284 = vpow.pop %v283
      %v285 = vmul.f32 %v239, 1.442695
      %v286 = vpow.pop %v285
      %v287 = vmul.f32 %v240, 1.442695
      %v288 = vpow.pop %v287
      %v289 = vmul.f32 %v241, 1.442695
      %v290 = vpow.pop %v289
      %v291 = vmul.f32 %v242, 1.442695
      %v292 = vpow.pop %v291
      %v293 = vmul.f32 %v243, 1.442695
      %v294 = vpow.pop %v293
      %v295 = vmul.f32 %v244, 1.442695
      %v296 = vpow.pop %v295
      %v297 = vmul.f32 %v245, 1.442695
      %v298 = vpow.pop %v297
      %v299 = vmul.f32 %v246, 1.442695
      %v300 = vpow.pop %v299
      %v301 = vmul.f32 %v247, 1.442695
      %v302 = vpow.pop %v301
      %v303 = vmul.f32 %v248, 1.442695
      %v304 = vpow.pop %v303
      %v305 = vmul.f32 %v249, 1.442695
      %v306 = vpow.pop %v305
      %v307 = vmul.f32 %v250, 1.442695
      %v308 = vpow.pop %v307
      %v309 = vmul.f32 %v251, 1.442695
      %v310 = vpow.pop %v309
      %v311 = vmul.f32 %v252, 1.442695
      %v312 = vpow.pop %v311
      %v313 = vmul.f32 %v253, 1.442695
      %v314 = vpow.pop %v313
      %v315 = vmul.f32 %v254, 1.442695
      %v316 = vpow.pop %v315
      %v317 = vmul.f32 %v255, 1.442695
      %v318 = vpow.pop %v317
      %v319 = vmul.f32 %v256, 1.442695
      %v320 = vpow.pop %v319
      %v321 = vmul.f32 %v257, 1.442695
      %v322 = vpow.pop %v321
      %v323 = vmul.f32 %v258, 1.442695
      %v324 = vpow.pop %v323
      %v325 = vmul.f32 %v259, 1.442695
      %v326 = vpow.pop %v325
      %v327 = vmul.f32 %v260, 1.442695
      %v328 = vpow.pop %v327
      %v329 = vmul.f32 %v261, 1.442695
      %v330 = vpow.pop %v329
      %v331 = vmul.f32 %v262, 1.442695
      %v332 = vpow.pop %v331
      %v333 = vmul.f32 %v263, 1.442695
      %v334 = vpow.pop %v333
      %v335 = vmul.f32 %v264, 1.442695
      %v336 = vpow.pop %v335
      %v337 = vmul.f32 %v265, 1.442695
      %v338 = vpow.pop %v337
      %v339 = vmul.f32 %v266, 1.442695
      %v340 = vpow.pop %v339
      %v341 = vmul.f32 %v267, 1.442695
      %v342 = vpow.pop %v341
      %v343 = vmul.f32 %v268, 1.442695
      %v344 = vpow.pop %v343
      %v345 = vmul.f32 %v269, 1.442695
      %v346 = vpow.pop %v345
      %v347 = vmul.f32 %v270, 1.442695
      %v348 = vpow.pop %v347
      %v349 = vmul.f32 %v271, 1.442695
      %v350 = vpow.pop %v349
      %v351 = vmul.f32 %v272, 1.442695
      %v352 = vpow.pop %v351
      %v353 = vmul.f32 %v273, 1.442695
      %v354 = vpow.pop %v353
      %v355 = vmul.f32 %v274, 1.442695
      %v356 = vpow.pop %v355
      %v357 = vmul.f32 %v275, 1.442695
      %v358 = vpow.pop %v357
      %v359 = vmul.f32 %v276, 1.442695
      %v360 = vpow.pop %v359
      %v361 = vadd.f32 %v278, 1.0
      %v362 = vadd.f32 %v280, 1.0
      %v363 = vadd.f32 %v282, 1.0
      %v364 = vadd.f32 %v284, 1.0
      %v365 = vadd.f32 %v286, 1.0
      %v366 = vadd.f32 %v288, 1.0
      %v367 = vadd.f32 %v290, 1.0
      %v368 = vadd.f32 %v292, 1.0
      %v369 = vadd.f32 %v294, 1.0
      %v370 = vadd.f32 %v296, 1.0
      %v371 = vadd.f32 %v298, 1.0
      %v372 = vadd.f32 %v300, 1.0
      %v373 = vadd.f32 %v302, 1.0
      %v374 = vadd.f32 %v304, 1.0
      %v375 = vadd.f32 %v306, 1.0
      %v376 = vadd.f32 %v308, 1.0
      %v377 = vadd.f32 %v310, 1.0
      %v378 = vadd.f32 %v312, 1.0
      %v379 = vadd.f32 %v314, 1.0
      %v380 = vadd.f32 %v316, 1.0
      %v381 = vadd.f32 %v318, 1.0
      %v382 = vadd.f32 %v320, 1.0
      %v383 = vadd.f32 %v322, 1.0
      %v384 = vadd.f32 %v324, 1.0
      %v385 = vadd.f32 %v326, 1.0
      %v386 = vadd.f32 %v328, 1.0
      %v387 = vadd.f32 %v330, 1.0
      %v388 = vadd.f32 %v332, 1.0
      %v389 = vadd.f32 %v334, 1.0
      %v390 = vadd.f32 %v336, 1.0
      %v391 = vadd.f32 %v338, 1.0
      %v392 = vadd.f32 %v340, 1.0
      %v393 = vadd.f32 %v342, 1.0
      %v394 = vadd.f32 %v344, 1.0
      %v395 = vadd.f32 %v346, 1.0
      %v396 = vadd.f32 %v348, 1.0
      %v397 = vadd.f32 %v350, 1.0
      %v398 = vadd.f32 %v352, 1.0
      %v399 = vadd.f32 %v354, 1.0
      %v400 = vadd.f32 %v356, 1.0
      %v401 = vadd.f32 %v358, 1.0
      %v402 = vadd.f32 %v360, 1.0
      %v403 = vrcp.pop %v361
      %v404 = vmul.f32 1.0, %v403
      %v405 = vrcp.pop %v362
      %v406 = vmul.f32 1.0, %v405
      %v407 = vrcp.pop %v363
      %v408 = vmul.f32 1.0, %v407
      %v409 = vrcp.pop %v364
      %v410 = vmul.f32 1.0, %v409
      %v411 = vrcp.pop %v365
      %v412 = vmul.f32 1.0, %v411
      %v413 = vrcp.pop %v366
      %v414 = vmul.f32 1.0, %v413
      %v415 = vrcp.pop %v367
      %v416 = vmul.f32 1.0, %v415
      %v417 = vrcp.pop %v368
      %v418 = vmul.f32 1.0, %v417
      %v419 = vrcp.pop %v369
      %v420 = vmul.f32 1.0, %v419
      %v421 = vrcp.pop %v370
      %v422 = vmul.f32 1.0, %v421
      %v423 = vrcp.pop %v371
      %v424 = vmul.f32 1.0, %v423
      %v425 = vrcp.pop %v372
      %v426 = vmul.f32 1.0, %v425
      %v427 = vrcp.pop %v373
      %v428 = vmul.f32 1.0, %v427
      %v429 = vrcp.pop %v374
      %v430 = vmul.f32 1.0, %v429
      %v431 = vrcp.pop %v375
      %v432 = vmul.f32 1.0, %v431
      %v433 = vrcp.pop %v376
      %v434 = vmul.f32 1.0, %v433
      %v435 = vrcp.pop %v377
      %v436 = vmul.f32 1.0, %v435
      %v437 = vrcp.pop %v378
      %v438 = vmul.f32 1.0, %v437
      %v439 = vrcp.pop %v379
      %v440 = vmul.f32 1.0, %v439
      %v441 = vrcp.pop %v380
      %v442 = vmul.f32 1.0, %v441
      %v443 = vrcp.pop %v381
      %v444 = vmul.f32 1.0, %v443
      %v445 = vrcp.pop %v382
      %v446 = vmul.f32 1.0, %v445
      %v447 = vrcp.pop %v383
      %v448 = vmul.f32 1.0, %v447
      %v449 = vrcp.pop %v384
      %v450 = vmul.f32 1.0, %v449
      %v451 = vrcp.pop %v385
      %v452 = vmul.f32 1.0, %v451
      %v453 = vrcp.pop %v386
      %v454 = vmul.f32 1.0, %v453
      %v455 = vrcp.pop %v387
      %v456 = vmul.f32 1.0, %v455
      %v457 = vrcp.pop %v388
      %v458 = vmul.f32 1.0, %v457
      %v459 = vrcp.pop %v389
      %v460 = vmul.f32 1.0, %v459
      %v461 = vrcp.pop %v390
      %v462 = vmul.f32 1.0, %v461
      %v463 = vrcp.pop %v391
      %v464 = vmul.f32 1.0, %v463
      %v465 = vrcp.pop %v392
      %v466 = vmul.f32 1.0, %v465
      %v467 = vrcp.pop %v393
      %v468 = vmul.f32 1.0, %v467
      %v469 = vrcp.pop %v394
      %v470 = vmul.f32 1.0, %v469
      %v471 = vrcp.pop %v395
      %v472 = vmul.f32 1.0, %v471
      %v473 = vrcp.pop %v396
      %v474 = vmul.f32 1.0, %v473
      %v475 = vrcp.pop %v397
      %v476 = vmul.f32 1.0, %v475
      %v477 = vrcp.pop %v398
      %v478 = vmul.f32 1.0, %v477
      %v479 = vrcp.pop %v399
      %v480 = vmul.f32 1.0, %v479
      %v481 = vrcp.pop %v400
      %v482 = vmul.f32 1.0, %v481
      %v483 = vrcp.pop %v401
      %v484 = vmul.f32 1.0, %v483
      %v485 = vrcp.pop %v402
      %v486 = vmul.f32 1.0, %v485
      %v487 = vld [vmem:[%s176] sm:$0xff]
      %v488 = vld [vmem:[%s176 + $0x8] sm:$0xff]
      %v489 = vld [vmem:[%s176 + $0x10] sm:$0xff]
      %v490 = vld [vmem:[%s176 + $0x18] sm:$0xff]
      %v491 = vld [vmem:[%s176 + $0x20] sm:$0xff]
      %v492 = vld [vmem:[%s176 + $0x28] sm:$0xff]
      %v493 = vld [vmem:[%s176 + $0x30] sm:$0xff]
      %v494 = vld [vmem:[%s176 + $0x38] sm:$0xff]
      %v495 = vld [vmem:[%s176 + $0x40] sm:$0xff]
      %v496 = vld [vmem:[%s176 + $0x48] sm:$0xff]
      %v497 = vld [vmem:[%s176 + $0x50] sm:$0xff]
      %v498 = vld [vmem:[%s176 + $0x58] sm:$0xff]
      %v499 = vld [vmem:[%s176 + $0x60] sm:$0xff]
      %v500 = vld [vmem:[%s176 + $0x68] sm:$0xff]
      %v501 = vld [vmem:[%s176 + $0x70] sm:$0xff]
      %v502 = vld [vmem:[%s176 + $0x78] sm:$0xff]
      %v503 = vld [vmem:[%s176 + $0x80] sm:$0xff]
      %v504 = vld [vmem:[%s176 + $0x88] sm:$0xff]
      %v505 = vld [vmem:[%s176 + $0x90] sm:$0xff]
      %v506 = vld [vmem:[%s176 + $0x98] sm:$0xff]
      %v507 = vld [vmem:[%s176 + $0xa0] sm:$0xff]
      %v508 = vld [vmem:[%s176 + $0xa8] sm:$0xff]
      %v509 = vld [vmem:[%s176 + $0xb0] sm:$0xff]
      %v510 = vld [vmem:[%s176 + $0xb8] sm:$0xff]
      %v511 = vld [vmem:[%s176 + $0xc0] sm:$0xff]
      %v512 = vld [vmem:[%s176 + $0xc8] sm:$0xff]
      %v513 = vld [vmem:[%s176 + $0xd0] sm:$0xff]
      %v514 = vld [vmem:[%s176 + $0xd8] sm:$0xff]
      %v515 = vld [vmem:[%s176 + $0xe0] sm:$0xff]
      %v516 = vld [vmem:[%s176 + $0xe8] sm:$0xff]
      %v517 = vld [vmem:[%s176 + $0xf0] sm:$0xff]
      %v518 = vld [vmem:[%s176 + $0xf8] sm:$0xff]
      %v519 = vld [vmem:[%s176 + $0x100] sm:$0xff]
      %v520 = vld [vmem:[%s176 + $0x108] sm:$0xff]
      %v521 = vld [vmem:[%s176 + $0x110] sm:$0xff]
      %v522 = vld [vmem:[%s176 + $0x118] sm:$0xff]
      %v523 = vld [vmem:[%s176 + $0x120] sm:$0xff]
      %v524 = vld [vmem:[%s176 + $0x128] sm:$0xff]
      %v525 = vld [vmem:[%s176 + $0x130] sm:$0xff]
      %v526 = vld [vmem:[%s176 + $0x138] sm:$0xff]
      %v527 = vld [vmem:[%s176 + $0x140] sm:$0xff]
      %v528 = vld [vmem:[%s176 + $0x148] sm:$0xff]
      %v529 = vld [vmem:[%s176 + $0x150] sm:$0xff]
      %v530 = vld [vmem:[%s176 + $0x158] sm:$0xff]
      %v531 = vld [vmem:[%s176 + $0x160] sm:$0xff]
      %v532 = vld [vmem:[%s176 + $0x168] sm:$0xff]
      %v533 = vld [vmem:[%s176 + $0x170] sm:$0xff]
      %v534 = vld [vmem:[%s176 + $0x178] sm:$0xff]
      %v535 = vld [vmem:[%s176 + $0x180] sm:$0xff]
      %v536 = vld [vmem:[%s176 + $0x188] sm:$0xff]
      %v537 = vld [vmem:[%s176 + $0x190] sm:$0xff]
      %v538 = vld [vmem:[%s176 + $0x198] sm:$0xff]
      %v539 = vld [vmem:[%s176 + $0x1a0] sm:$0xff]
      %v540 = vld [vmem:[%s176 + $0x1a8] sm:$0xff]
      %v541 = vld [vmem:[%s176 + $0x1b0] sm:$0xff]
      %v542 = vld [vmem:[%s176 + $0x1b8] sm:$0xff]
      %v543 = vld [vmem:[%s176 + $0x1c0] sm:$0xff]
      %v544 = vld [vmem:[%s176 + $0x1c8] sm:$0xff]
      %v545 = vld [vmem:[%s176 + $0x1d0] sm:$0xff]
      %v546 = vld [vmem:[%s176 + $0x1d8] sm:$0xff]
      %v547 = vld [vmem:[%s176 + $0x1e0] sm:$0xff]
      %v548 = vld [vmem:[%s176 + $0x1e8] sm:$0xff]
      %v549 = vld [vmem:[%s176 + $0x1f0] sm:$0xff]
      %v550 = vld [vmem:[%s176 + $0x1f8] sm:$0xff]
      %v551 = vld [vmem:[%s176 + $0x200] sm:$0xff]
      %v552 = vld [vmem:[%s176 + $0x208] sm:$0xff]
      %v553 = vld [vmem:[%s176 + $0x210] sm:$0xff]
      %v554 = vld [vmem:[%s176 + $0x218] sm:$0xff]
      %v555 = vld [vmem:[%s176 + $0x220] sm:$0xff]
      %v556 = vld [vmem:[%s176 + $0x228] sm:$0xff]
      %v557 = vld [vmem:[%s176 + $0x230] sm:$0xff]
      %v558 = vld [vmem:[%s176 + $0x238] sm:$0xff]
      %v559 = vld [vmem:[%s176 + $0x240] sm:$0xff]
      %v560 = vld [vmem:[%s176 + $0x248] sm:$0xff]
      %v561 = vld [vmem:[%s176 + $0x250] sm:$0xff]
      %v562 = vld [vmem:[%s176 + $0x258] sm:$0xff]
      %v563 = vld [vmem:[%s176 + $0x260] sm:$0xff]
      %v564 = vld [vmem:[%s176 + $0x268] sm:$0xff]
      %v565 = vld [vmem:[%s176 + $0x270] sm:$0xff]
      %v566 = vld [vmem:[%s176 + $0x278] sm:$0xff]
      %v567 = vld [vmem:[%s176 + $0x280] sm:$0xff]
      %v568 = vld [vmem:[%s176 + $0x288] sm:$0xff]
      %v569 = vld [vmem:[%s176 + $0x290] sm:$0xff]
      %v570 = vld [vmem:[%s176 + $0x298] sm:$0xff]
      %572 = vset.pattern.permute.xlu0 0
      %573 = vperm.xlu0 %572, %v404
      %v574 = vpop.permute.xlu0 %573
      %577 = vset.pattern.permute.xlu0 0
      %578 = vperm.xlu0 %577, %v406
      %v579 = vpop.permute.xlu0 %578
      %582 = vset.pattern.permute.xlu0 0
      %583 = vperm.xlu0 %582, %v408
      %v584 = vpop.permute.xlu0 %583
      %587 = vset.pattern.permute.xlu0 0
      %588 = vperm.xlu0 %587, %v410
      %v589 = vpop.permute.xlu0 %588
      %592 = vset.pattern.permute.xlu0 0
      %593 = vperm.xlu0 %592, %v412
      %v594 = vpop.permute.xlu0 %593
      %597 = vset.pattern.permute.xlu0 0
      %598 = vperm.xlu0 %597, %v414
      %v599 = vpop.permute.xlu0 %598
      %602 = vset.pattern.permute.xlu0 0
      %603 = vperm.xlu0 %602, %v416
      %v604 = vpop.permute.xlu0 %603
      %607 = vset.pattern.permute.xlu0 0
      %608 = vperm.xlu0 %607, %v418
      %v609 = vpop.permute.xlu0 %608
      %612 = vset.pattern.permute.xlu0 0
      %613 = vperm.xlu0 %612, %v420
      %v614 = vpop.permute.xlu0 %613
      %617 = vset.pattern.permute.xlu0 0
      %618 = vperm.xlu0 %617, %v422
      %v619 = vpop.permute.xlu0 %618
      %622 = vset.pattern.permute.xlu0 0
      %623 = vperm.xlu0 %622, %v424
      %v624 = vpop.permute.xlu0 %623
      %627 = vset.pattern.permute.xlu0 0
      %628 = vperm.xlu0 %627, %v426
      %v629 = vpop.permute.xlu0 %628
      %632 = vset.pattern.permute.xlu0 0
      %633 = vperm.xlu0 %632, %v428
      %v634 = vpop.permute.xlu0 %633
      %637 = vset.pattern.permute.xlu0 0
      %638 = vperm.xlu0 %637, %v430
      %v639 = vpop.permute.xlu0 %638
      %642 = vset.pattern.permute.xlu0 0
      %643 = vperm.xlu0 %642, %v432
      %v644 = vpop.permute.xlu0 %643
      %647 = vset.pattern.permute.xlu0 0
      %648 = vperm.xlu0 %647, %v434
      %v649 = vpop.permute.xlu0 %648
      %652 = vset.pattern.permute.xlu0 0
      %653 = vperm.xlu0 %652, %v436
      %v654 = vpop.permute.xlu0 %653
      %657 = vset.pattern.permute.xlu0 0
      %658 = vperm.xlu0 %657, %v438
      %v659 = vpop.permute.xlu0 %658
      %662 = vset.pattern.permute.xlu0 0
      %663 = vperm.xlu0 %662, %v440
      %v664 = vpop.permute.xlu0 %663
      %667 = vset.pattern.permute.xlu0 0
      %668 = vperm.xlu0 %667, %v442
      %v669 = vpop.permute.xlu0 %668
      %672 = vset.pattern.permute.xlu0 0
      %673 = vperm.xlu0 %672, %v444
      %v674 = vpop.permute.xlu0 %673
      %677 = vset.pattern.permute.xlu0 0
      %678 = vperm.xlu0 %677, %v446
      %v679 = vpop.permute.xlu0 %678
      %682 = vset.pattern.permute.xlu0 0
      %683 = vperm.xlu0 %682, %v448
      %v684 = vpop.permute.xlu0 %683
      %687 = vset.pattern.permute.xlu0 0
      %688 = vperm.xlu0 %687, %v450
      %v689 = vpop.permute.xlu0 %688
      %692 = vset.pattern.permute.xlu0 0
      %693 = vperm.xlu0 %692, %v452
      %v694 = vpop.permute.xlu0 %693
      %697 = vset.pattern.permute.xlu0 0
      %698 = vperm.xlu0 %697, %v454
      %v699 = vpop.permute.xlu0 %698
      %702 = vset.pattern.permute.xlu0 0
      %703 = vperm.xlu0 %702, %v456
      %v704 = vpop.permute.xlu0 %703
      %707 = vset.pattern.permute.xlu0 0
      %708 = vperm.xlu0 %707, %v458
      %v709 = vpop.permute.xlu0 %708
      %712 = vset.pattern.permute.xlu0 0
      %713 = vperm.xlu0 %712, %v460
      %v714 = vpop.permute.xlu0 %713
      %717 = vset.pattern.permute.xlu0 0
      %718 = vperm.xlu0 %717, %v462
      %v719 = vpop.permute.xlu0 %718
      %722 = vset.pattern.permute.xlu0 0
      %723 = vperm.xlu0 %722, %v464
      %v724 = vpop.permute.xlu0 %723
      %727 = vset.pattern.permute.xlu0 0
      %728 = vperm.xlu0 %727, %v466
      %v729 = vpop.permute.xlu0 %728
      %732 = vset.pattern.permute.xlu0 0
      %733 = vperm.xlu0 %732, %v468
      %v734 = vpop.permute.xlu0 %733
      %737 = vset.pattern.permute.xlu0 0
      %738 = vperm.xlu0 %737, %v470
      %v739 = vpop.permute.xlu0 %738
      %742 = vset.pattern.permute.xlu0 0
      %743 = vperm.xlu0 %742, %v472
      %v744 = vpop.permute.xlu0 %743
      %747 = vset.pattern.permute.xlu0 0
      %748 = vperm.xlu0 %747, %v474
      %v749 = vpop.permute.xlu0 %748
      %752 = vset.pattern.permute.xlu0 0
      %753 = vperm.xlu0 %752, %v476
      %v754 = vpop.permute.xlu0 %753
      %757 = vset.pattern.permute.xlu0 0
      %758 = vperm.xlu0 %757, %v478
      %v759 = vpop.permute.xlu0 %758
      %762 = vset.pattern.permute.xlu0 0
      %763 = vperm.xlu0 %762, %v480
      %v764 = vpop.permute.xlu0 %763
      %767 = vset.pattern.permute.xlu0 0
      %768 = vperm.xlu0 %767, %v482
      %v769 = vpop.permute.xlu0 %768
      %772 = vset.pattern.permute.xlu0 0
      %773 = vperm.xlu0 %772, %v484
      %v774 = vpop.permute.xlu0 %773
      %777 = vset.pattern.permute.xlu0 0
      %778 = vperm.xlu0 %777, %v486
      %v779 = vpop.permute.xlu0 %778
      %v781 = vmul.f32 %v574, %v487
      %v782 = vmul.f32 %v574, %v488
      %v783 = vmul.f32 %v579, %v489
      %v784 = vmul.f32 %v579, %v490
      %v785 = vmul.f32 %v584, %v491
      %v786 = vmul.f32 %v584, %v492
      %v787 = vmul.f32 %v589, %v493
      %v788 = vmul.f32 %v589, %v494
      %v789 = vmul.f32 %v594, %v495
      %v790 = vmul.f32 %v594, %v496
      %v791 = vmul.f32 %v599, %v497
      %v792 = vmul.f32 %v599, %v498
      %v793 = vmul.f32 %v604, %v499
      %v794 = vmul.f32 %v604, %v500
      %v795 = vmul.f32 %v609, %v501
      %v796 = vmul.f32 %v609, %v502
      %v797 = vmul.f32 %v614, %v503
      %v798 = vmul.f32 %v614, %v504
      %v799 = vmul.f32 %v619, %v505
      %v800 = vmul.f32 %v619, %v506
      %v801 = vmul.f32 %v624, %v507
      %v802 = vmul.f32 %v624, %v508
      %v803 = vmul.f32 %v629, %v509
      %v804 = vmul.f32 %v629, %v510
      %v805 = vmul.f32 %v634, %v511
      %v806 = vmul.f32 %v634, %v512
      %v807 = vmul.f32 %v639, %v513
      %v808 = vmul.f32 %v639, %v514
      %v809 = vmul.f32 %v644, %v515
      %v810 = vmul.f32 %v644, %v516
      %v811 = vmul.f32 %v649, %v517
      %v812 = vmul.f32 %v649, %v518
      %v813 = vmul.f32 %v654, %v519
      %v814 = vmul.f32 %v654, %v520
      %v815 = vmul.f32 %v659, %v521
      %v816 = vmul.f32 %v659, %v522
      %v817 = vmul.f32 %v664, %v523
      %v818 = vmul.f32 %v664, %v524
      %v819 = vmul.f32 %v669, %v525
      %v820 = vmul.f32 %v669, %v526
      %v821 = vmul.f32 %v674, %v527
      %v822 = vmul.f32 %v674, %v528
      %v823 = vmul.f32 %v679, %v529
      %v824 = vmul.f32 %v679, %v530
      %v825 = vmul.f32 %v684, %v531
      %v826 = vmul.f32 %v684, %v532
      %v827 = vmul.f32 %v689, %v533
      %v828 = vmul.f32 %v689, %v534
      %v829 = vmul.f32 %v694, %v535
      %v830 = vmul.f32 %v694, %v536
      %v831 = vmul.f32 %v699, %v537
      %v832 = vmul.f32 %v699, %v538
      %v833 = vmul.f32 %v704, %v539
      %v834 = vmul.f32 %v704, %v540
      %v835 = vmul.f32 %v709, %v541
      %v836 = vmul.f32 %v709, %v542
      %v837 = vmul.f32 %v714, %v543
      %v838 = vmul.f32 %v714, %v544
      %v839 = vmul.f32 %v719, %v545
      %v840 = vmul.f32 %v719, %v546
      %v841 = vmul.f32 %v724, %v547
      %v842 = vmul.f32 %v724, %v548
      %v843 = vmul.f32 %v729, %v549
      %v844 = vmul.f32 %v729, %v550
      %v845 = vmul.f32 %v734, %v551
      %v846 = vmul.f32 %v734, %v552
      %v847 = vmul.f32 %v739, %v553
      %v848 = vmul.f32 %v739, %v554
      %v849 = vmul.f32 %v744, %v555
      %v850 = vmul.f32 %v744, %v556
      %v851 = vmul.f32 %v749, %v557
      %v852 = vmul.f32 %v749, %v558
      %v853 = vmul.f32 %v754, %v559
      %v854 = vmul.f32 %v754, %v560
      %v855 = vmul.f32 %v759, %v561
      %v856 = vmul.f32 %v759, %v562
      %v857 = vmul.f32 %v764, %v563
      %v858 = vmul.f32 %v764, %v564
      %v859 = vmul.f32 %v769, %v565
      %v860 = vmul.f32 %v769, %v566
      %v861 = vmul.f32 %v774, %v567
      %v862 = vmul.f32 %v774, %v568
      %v863 = vmul.f32 %v779, %v569
      %v864 = vmul.f32 %v779, %v570
      %865 = vst [vmem:[%s188] sm:$0xff] %v781
      %vm866 = vcmask 556032
      %867 = vst.msk [vmem:[%s188 + $0x8] sm:$0xff] %vm866, %v782
      %868 = vst [vmem:[%s188 + $0x10] sm:$0xff] %v783
      %869 = vst.msk [vmem:[%s188 + $0x18] sm:$0xff] %vm866, %v784
      %870 = vst [vmem:[%s188 + $0x20] sm:$0xff] %v785
      %871 = vst.msk [vmem:[%s188 + $0x28] sm:$0xff] %vm866, %v786
      %872 = vst [vmem:[%s188 + $0x30] sm:$0xff] %v787
      %873 = vst.msk [vmem:[%s188 + $0x38] sm:$0xff] %vm866, %v788
      %874 = vst [vmem:[%s188 + $0x40] sm:$0xff] %v789
      %875 = vst.msk [vmem:[%s188 + $0x48] sm:$0xff] %vm866, %v790
      %876 = vst [vmem:[%s188 + $0x50] sm:$0xff] %v791
      %877 = vst.msk [vmem:[%s188 + $0x58] sm:$0xff] %vm866, %v792
      %878 = vst [vmem:[%s188 + $0x60] sm:$0xff] %v793
      %879 = vst.msk [vmem:[%s188 + $0x68] sm:$0xff] %vm866, %v794
      %880 = vst [vmem:[%s188 + $0x70] sm:$0xff] %v795
      %881 = vst.msk [vmem:[%s188 + $0x78] sm:$0xff] %vm866, %v796
      %882 = vst [vmem:[%s188 + $0x80] sm:$0xff] %v797
      %883 = vst.msk [vmem:[%s188 + $0x88] sm:$0xff] %vm866, %v798
      %884 = vst [vmem:[%s188 + $0x90] sm:$0xff] %v799
      %885 = vst.msk [vmem:[%s188 + $0x98] sm:$0xff] %vm866, %v800
      %886 = vst [vmem:[%s188 + $0xa0] sm:$0xff] %v801
      %887 = vst.msk [vmem:[%s188 + $0xa8] sm:$0xff] %vm866, %v802
      %888 = vst [vmem:[%s188 + $0xb0] sm:$0xff] %v803
      %889 = vst.msk [vmem:[%s188 + $0xb8] sm:$0xff] %vm866, %v804
      %890 = vst [vmem:[%s188 + $0xc0] sm:$0xff] %v805
      %891 = vst.msk [vmem:[%s188 + $0xc8] sm:$0xff] %vm866, %v806
      %892 = vst [vmem:[%s188 + $0xd0] sm:$0xff] %v807
      %893 = vst.msk [vmem:[%s188 + $0xd8] sm:$0xff] %vm866, %v808
      %894 = vst [vmem:[%s188 + $0xe0] sm:$0xff] %v809
      %895 = vst.msk [vmem:[%s188 + $0xe8] sm:$0xff] %vm866, %v810
      %896 = vst [vmem:[%s188 + $0xf0] sm:$0xff] %v811
      %897 = vst.msk [vmem:[%s188 + $0xf8] sm:$0xff] %vm866, %v812
      %898 = vst [vmem:[%s188 + $0x100] sm:$0xff] %v813
      %899 = vst.msk [vmem:[%s188 + $0x108] sm:$0xff] %vm866, %v814
      %900 = vst [vmem:[%s188 + $0x110] sm:$0xff] %v815
      %901 = vst.msk [vmem:[%s188 + $0x118] sm:$0xff] %vm866, %v816
      %902 = vst [vmem:[%s188 + $0x120] sm:$0xff] %v817
      %903 = vst.msk [vmem:[%s188 + $0x128] sm:$0xff] %vm866, %v818
      %904 = vst [vmem:[%s188 + $0x130] sm:$0xff] %v819
      %905 = vst.msk [vmem:[%s188 + $0x138] sm:$0xff] %vm866, %v820
      %906 = vst [vmem:[%s188 + $0x140] sm:$0xff] %v821
      %907 = vst.msk [vmem:[%s188 + $0x148] sm:$0xff] %vm866, %v822
      %908 = vst [vmem:[%s188 + $0x150] sm:$0xff] %v823
      %909 = vst.msk [vmem:[%s188 + $0x158] sm:$0xff] %vm866, %v824
      %910 = vst [vmem:[%s188 + $0x160] sm:$0xff] %v825
      %911 = vst.msk [vmem:[%s188 + $0x168] sm:$0xff] %vm866, %v826
      %912 = vst [vmem:[%s188 + $0x170] sm:$0xff] %v827
      %913 = vst.msk [vmem:[%s188 + $0x178] sm:$0xff] %vm866, %v828
      %914 = vst [vmem:[%s188 + $0x180] sm:$0xff] %v829
      %915 = vst.msk [vmem:[%s188 + $0x188] sm:$0xff] %vm866, %v830
      %916 = vst [vmem:[%s188 + $0x190] sm:$0xff] %v831
      %917 = vst.msk [vmem:[%s188 + $0x198] sm:$0xff] %vm866, %v832
      %918 = vst [vmem:[%s188 + $0x1a0] sm:$0xff] %v833
      %919 = vst.msk [vmem:[%s188 + $0x1a8] sm:$0xff] %vm866, %v834
      %920 = vst [vmem:[%s188 + $0x1b0] sm:$0xff] %v835
      %921 = vst.msk [vmem:[%s188 + $0x1b8] sm:$0xff] %vm866, %v836
      %922 = vst [vmem:[%s188 + $0x1c0] sm:$0xff] %v837
      %923 = vst.msk [vmem:[%s188 + $0x1c8] sm:$0xff] %vm866, %v838
      %924 = vst [vmem:[%s188 + $0x1d0] sm:$0xff] %v839
      %925 = vst.msk [vmem:[%s188 + $0x1d8] sm:$0xff] %vm866, %v840
      %926 = vst [vmem:[%s188 + $0x1e0] sm:$0xff] %v841
      %927 = vst.msk [vmem:[%s188 + $0x1e8] sm:$0xff] %vm866, %v842
      %928 = vst [vmem:[%s188 + $0x1f0] sm:$0xff] %v843
      %929 = vst.msk [vmem:[%s188 + $0x1f8] sm:$0xff] %vm866, %v844
      %930 = vst [vmem:[%s188 + $0x200] sm:$0xff] %v845
      %931 = vst.msk [vmem:[%s188 + $0x208] sm:$0xff] %vm866, %v846
      %932 = vst [vmem:[%s188 + $0x210] sm:$0xff] %v847
      %933 = vst.msk [vmem:[%s188 + $0x218] sm:$0xff] %vm866, %v848
      %934 = vst [vmem:[%s188 + $0x220] sm:$0xff] %v849
      %935 = vst.msk [vmem:[%s188 + $0x228] sm:$0xff] %vm866, %v850
      %936 = vst [vmem:[%s188 + $0x230] sm:$0xff] %v851
      %937 = vst.msk [vmem:[%s188 + $0x238] sm:$0xff] %vm866, %v852
      %938 = vst [vmem:[%s188 + $0x240] sm:$0xff] %v853
      %939 = vst.msk [vmem:[%s188 + $0x248] sm:$0xff] %vm866, %v854
      %940 = vst [vmem:[%s188 + $0x250] sm:$0xff] %v855
      %941 = vst.msk [vmem:[%s188 + $0x258] sm:$0xff] %vm866, %v856
      %942 = vst [vmem:[%s188 + $0x260] sm:$0xff] %v857
      %943 = vst.msk [vmem:[%s188 + $0x268] sm:$0xff] %vm866, %v858
      %944 = vst [vmem:[%s188 + $0x270] sm:$0xff] %v859
      %945 = vst.msk [vmem:[%s188 + $0x278] sm:$0xff] %vm866, %v860
      %946 = vst [vmem:[%s188 + $0x280] sm:$0xff] %v861
      %947 = vst.msk [vmem:[%s188 + $0x288] sm:$0xff] %vm866, %v862
      %948 = vst [vmem:[%s188 + $0x290] sm:$0xff] %v863
      %949 = vst.msk [vmem:[%s188 + $0x298] sm:$0xff] %vm866, %v864
      %s950 = smul.u32 42, %s17
      %s951 = smul.u32 2, %s18
      %p952 = scmp.lt.s32.totalorder %s950, 167
      %s953 = scalar_select %p952, %s950, 167
      %p954 = scmp.lt.s32.totalorder %s951, 1
      %s955 = scalar_select %p954, %s951, 1
      %s956 = smul.addr %s953, 2
      %s957 = sadd.s32 %s955, %s956
      %s958 = smul.addr %s957, 8
      %s959 = scalar_lea.vmem %s2, %s958
      // Predicated region
      $region29: #{tpu_custom_call.1} parent=27 // pred_check
        %p960 = pneg %p94
      $region30: #{tpu_custom_call.1} parent=27 // pred_check_branch
        %962 = sbr.rel (%p960) target = $region32
      $region31: #{tpu_custom_call.1} parent=27 // pred_region
        %s963 = smul.u32 42, %s17
        %s964 = smul.u32 2, %s18
      $region32: #{tpu_custom_call.1} parent=27 // pred_fallthru
        _
    $region28: #{tpu_custom_call.1} parent=5 // pred_fallthru
      _
    %p965 = scmp.le.s32.totalorder 2, %s8
    // Predicated region
    $region33: #{tpu_custom_call.1} parent=5 // pred_check
      %p966 = pneg %p965
    $region34: #{tpu_custom_call.1} parent=5 // pred_check_branch
      %968 = sbr.rel (%p966) target = $region36
    $region35: #{tpu_custom_call.1} parent=5 // pred_region
      %s969 = ssub.s32 %s8, 2
      // Predicated region
      $region37: #{tpu_custom_call.1} parent=35 // pred_check
        %p970 = pneg %p100
      $region38: #{tpu_custom_call.1} parent=35 // pred_check_branch
        %972 = sbr.rel (%p970) target = $region40
      $region39: #{tpu_custom_call.1} parent=35 // pred_region
        %s973 = smul.u32 42, %s19
        %s974 = smul.u32 2, %s20
        %p975 = scmp.lt.s32.totalorder %s973, 167
        %s976 = scalar_select %p975, %s973, 167
        %p977 = scmp.lt.s32.totalorder %s974, 1
        %s978 = scalar_select %p977, %s974, 1
        %s979 = smul.addr %s976, 2
        %s980 = sadd.s32 %s978, %s979
        %s981 = smul.addr %s980, 8
        %s982 = scalar_lea.vmem %s2, %s981
      $region40: #{tpu_custom_call.1} parent=35 // pred_fallthru
        _
    $region36: #{tpu_custom_call.1} parent=5 // pred_fallthru
      _
  $region6: #{tpu_custom_call.1} parent=0 // loop_footer
    %s12 = sadd.s32 1, %s8
  $region7: #{tpu_custom_call.1} parent=0 // loop_footer_branch
    %7 = sbr.rel target = $region3
  $region8: #{tpu_custom_call.1} parent=0 // loop_exit
    _

</llo_original>
